<compile_context>
chip_gen: v7x
topology: tpu7x:2x2x1
jax: 0.10.0
libtpu: 0.0.40
codegen_flags: <defaults>
</compile_context>

<pallas_src>
import functools

import jax
import jax.numpy as jnp
from jax.experimental import pallas as pl
from jax.experimental.pallas import tpu as pltpu

_TARGET_TILE_ELEMS = 512 * 1024   # ~2 MiB f32 per input per tile
_MAX_TILE_COLS = 8192             # lane-tile width (multiple of 128)


def _choose_tiles(bc, hw):
    """Pick (tile_rows, tile_cols): lane tile multiple of 128 (or full hw),
    row tile multiple of 8 (or full bc when bc < 8), ~_TARGET_TILE_ELEMS."""
    tile_cols = hw if hw <= _MAX_TILE_COLS else _MAX_TILE_COLS
    if bc < 8:
        tile_rows = bc
    else:
        rows = max(8, (_TARGET_TILE_ELEMS // tile_cols) // 8 * 8)
        tile_rows = min(rows, (bc // 8) * 8)
    return tile_rows, tile_cols


def _acc_sums_kernel(w_ref, o_ref, t_ref, sums_ref,
                     acc_wot, acc_woo, acc_wtt, *,
                     tile_rows, tile_cols, chunk_rows,
                     bc, hw, n_row_tiles, n_col_tiles,
                     row_off, col_off):
    c = pl.program_id(0)    # split (megacore) index
    jc = pl.program_id(1)   # column-tile index within this split
    ir = pl.program_id(2)   # row-tile index within this split
    col_tile = c * col_off + jc
    row_tile = c * row_off + ir

    @pl.when(jnp.logical_and(jc == 0, ir == 0))
    def _init():
        acc_wot[...] = jnp.zeros_like(acc_wot)
        acc_woo[...] = jnp.zeros_like(acc_woo)
        acc_wtt[...] = jnp.zeros_like(acc_wtt)

    w = w_ref[...].astype(jnp.float32)   # (1, tile_cols); row-broadcast below
    o = o_ref[...].astype(jnp.float32)   # (tile_rows, tile_cols)
    t = t_ref[...].astype(jnp.float32)   # (tile_rows, tile_cols)

    n_chunks = tile_rows // chunk_rows

    def fold(p):
        # Tree-add sublane chunks: (tile_rows, tc) -> (chunk_rows, tc).
        # Static 8-aligned slices + VPU adds; one acc RMW per tile after this.
        r = p[0:chunk_rows, :]
        for k in range(1, n_chunks):
            r = r + p[k * chunk_rows:(k + 1) * chunk_rows, :]
        return r

    def accumulate(wv, ov, tv):
        wo = wv * ov
        wt = wv * tv
        acc_wot[...] += fold(wo * tv)    # w * o * t
        acc_woo[...] += fold(wo * ov)    # w * o**2
        acc_wtt[...] += fold(wt * tv)    # w * t**2

    # Masking is only ever needed on the last row/col tile; interior tiles
    # take the unmasked fast path (no extra VALU work on the hot path).
    conds = []
    if bc % tile_rows != 0:
        conds.append(row_tile == n_row_tiles - 1)
    if hw % tile_cols != 0:
        conds.append(col_tile == n_col_tiles - 1)

    if not conds:
        accumulate(w, o, t)
    else:
        is_partial = functools.reduce(jnp.logical_or, conds)

        @pl.when(is_partial)
        def _masked():
            rows = jax.lax.broadcasted_iota(jnp.int32, (tile_rows, 1), 0)
            cols = jax.lax.broadcasted_iota(jnp.int32, (1, tile_cols), 1)
            row_ok = (row_tile * tile_rows + rows) < bc
            col_ok = (col_tile * tile_cols + cols) < hw
            mask = jnp.logical_and(row_ok, col_ok)
            # Zero every out-of-bounds operand (garbage VMEM may be NaN/Inf).
            accumulate(jnp.where(col_ok, w, 0.0),
                       jnp.where(mask, o, 0.0),
                       jnp.where(mask, t, 0.0))

        @pl.when(jnp.logical_not(is_partial))
        def _fast():
            accumulate(w, o, t)

    @pl.when(jnp.logical_and(jc == pl.num_programs(1) - 1,
                             ir == pl.num_programs(2) - 1))
    def _finalize():
        sums_ref[0, 0] = jnp.sum(acc_wot[...])
        sums_ref[0, 1] = jnp.sum(acc_woo[...])
        sums_ref[0, 2] = jnp.sum(acc_wtt[...])


def weighted_acc_loss(weights, output, target):
    """weights: broadcastable to (1, 1, H, W) (e.g. latitude weights (1,1,H,1));
    output/target: (B, C, H, W)."""
    B, C, H, W = output.shape
    bc, hw = B * C, H * W

    o2 = output.reshape(bc, hw)                                     # free view
    t2 = target.reshape(bc, hw)                                     # free view
    w_row = (jnp.broadcast_to(weights, (1, 1, H, W))
             .reshape(1, hw).astype(jnp.float32))                   # tiny row

    tile_rows, tile_cols = _choose_tiles(bc, hw)
    n_row_tiles = -(-bc // tile_rows)
    n_col_tiles = -(-hw // tile_cols)
    chunk_rows = 8 if tile_rows % 8 == 0 else tile_rows

    # Dual-TensorCore split (v7x): leading "parallel" axis of size 2 when the
    # column- or row-tile count splits evenly.  Even split => single-core
    # chips (v5e/v6e) pay zero extra streaming; per-split partial sums are
    # combined in plain JAX below.
    if n_col_tiles % 2 == 0:
        n_splits, col_groups, row_groups = 2, n_col_tiles // 2, n_row_tiles
        col_off, row_off = n_col_tiles // 2, 0
    elif n_row_tiles % 2 == 0:
        n_splits, col_groups, row_groups = 2, n_col_tiles, n_row_tiles // 2
        col_off, row_off = 0, n_row_tiles // 2
    else:
        n_splits, col_groups, row_groups = 1, n_col_tiles, n_row_tiles
        col_off, row_off = 0, 0

    kernel = functools.partial(
        _acc_sums_kernel,
        tile_rows=tile_rows, tile_cols=tile_cols, chunk_rows=chunk_rows,
        bc=bc, hw=hw, n_row_tiles=n_row_tiles, n_col_tiles=n_col_tiles,
        row_off=row_off, col_off=col_off)

    partials = pl.pallas_call(
        kernel,
        out_shape=jax.ShapeDtypeStruct((n_splits, 3), jnp.float32),
        grid_spec=pltpu.PrefetchScalarGridSpec(
            num_scalar_prefetch=0,
            grid=(n_splits, col_groups, row_groups),
            in_specs=[
                pl.BlockSpec((1, tile_cols),
                             lambda c, j, i: (0, c * col_off + j)),      # w
                pl.BlockSpec((tile_rows, tile_cols),
                             lambda c, j, i: (c * row_off + i,
                                              c * col_off + j)),         # out
                pl.BlockSpec((tile_rows, tile_cols),
                             lambda c, j, i: (c * row_off + i,
                                              c * col_off + j)),         # tgt
            ],
            out_specs=pl.BlockSpec((1, 3), lambda c, j, i: (c, 0),
                                   memory_space=pltpu.SMEM),
            scratch_shapes=[
                pltpu.VMEM((chunk_rows, tile_cols), jnp.float32),
                pltpu.VMEM((chunk_rows, tile_cols), jnp.float32),
                pltpu.VMEM((chunk_rows, tile_cols), jnp.float32),
            ],
        ),
        compiler_params=pltpu.CompilerParams(
            dimension_semantics=("parallel", "arbitrary", "arbitrary"),
            vmem_limit_bytes=32 * 1024 * 1024,
        ),
    )(w_row, o2, t2)

    sums = jnp.sum(partials, axis=0)
    num, sum_o2, sum_t2 = sums[0], sums[1], sums[2]
    denom = jnp.sqrt(sum_o2 * sum_t2)
    return 1.0 - num / denom


def _reference(weights, output, target):
    w = jnp.broadcast_to(weights, output.shape).astype(jnp.float32)
    o = output.astype(jnp.float32)
    t = target.astype(jnp.float32)
    num = jnp.sum(w * o * t)
    denom = jnp.sqrt(jnp.sum(w * o * o) * jnp.sum(w * t * t))
    return 1.0 - num / denom


def _make_case(key, B, C, H, W):
    k1, k2 = jax.random.split(key)
    output = jax.random.normal(k1, (B, C, H, W), dtype=jnp.float32)
    target = jax.random.normal(k2, (B, C, H, W), dtype=jnp.float32)
    lat = jnp.linspace(-1.0, 1.0, H)
    weights = (jnp.cos(lat * jnp.pi / 2.0) + 0.1).reshape(1, 1, H, 1)
    return weights.astype(jnp.float32), output, target


if __name__ == "__main__":
    key = jax.random.PRNGKey(0)

    # Primary small case (B=2, C=4, H=16, W=16): single tile, fast path only.
    w0, o0, t0 = _make_case(key, 2, 4, 16, 16)
    loss = jax.block_until_ready(weighted_acc_loss(w0, o0, t0))
    ref = _reference(w0, o0, t0)
    assert jnp.allclose(loss, ref, rtol=1e-4, atol=1e-6), (loss, ref)

    # Coverage: 2-D tiling + partial row & column tiles + dual-core column
    # split (bc=12, hw=10240 -> 2 col tiles, 2 row tiles, both last-partial).
    w1, o1, t1 = _make_case(jax.random.fold_in(key, 1), 3, 4, 64, 160)
    loss1 = jax.block_until_ready(weighted_acc_loss(w1, o1, t1))
    ref1 = _reference(w1, o1, t1)
    assert jnp.allclose(loss1, ref1, rtol=1e-4, atol=1e-6), (loss1, ref1)

    # Coverage: sublane-chunk fold (tile_rows=64 -> 8 chunks) + dual-core row
    # split + partial last row tile (bc=80, hw=8192).
    w2, o2_, t2_ = _make_case(jax.random.fold_in(key, 2), 8, 10, 64, 128)
    loss2 = jax.block_until_ready(weighted_acc_loss(w2, o2_, t2_))
    ref2 = _reference(w2, o2_, t2_)
    assert jnp.allclose(loss2, ref2, rtol=1e-4, atol=1e-6), (loss2, ref2)

    print("KERNEL_OK")
</pallas_src>

<mosaic_0001>
module attributes {stable_mosaic.version = 11 : i64} {
  func.func @_acc_sums_kernel(%arg0: i32, %arg1: i32, %arg2: i32, %arg3: memref<1x256xf32, #tpu.memory_space<vmem>>, %arg4: memref<8x256xf32, #tpu.memory_space<vmem>>, %arg5: memref<8x256xf32, #tpu.memory_space<vmem>>, %arg6: memref<1x3xf32, #tpu.memory_space<smem>>, %arg7: memref<8x256xf32, #tpu.memory_space<vmem>>, %arg8: memref<8x256xf32, #tpu.memory_space<vmem>>, %arg9: memref<8x256xf32, #tpu.memory_space<vmem>>) attributes {dimension_semantics = [#tpu.dimension_semantics<parallel>, #tpu.dimension_semantics<arbitrary>, #tpu.dimension_semantics<arbitrary>], iteration_bounds = array<i64: 1, 1, 1>, scalar_prefetch = 0 : i64, scratch_operands = 3 : i64, tpu.core_type = #tpu.core_type<tc>, window_params = [{transform_indices = @transform_0, window_bounds = array<i64: 1, 256>}, {transform_indices = @transform_1, window_bounds = array<i64: 8, 256>}, {transform_indices = @transform_2, window_bounds = array<i64: 8, 256>}, {transform_indices = @transform_3, window_bounds = array<i64: 1, 3>}]} {
    %c0_i32 = arith.constant 0 : i32
    %0 = arith.cmpi eq, %arg1, %c0_i32 : i32
    %c0_i32_0 = arith.constant 0 : i32
    %1 = arith.cmpi eq, %arg2, %c0_i32_0 : i32
    %2 = arith.andi %0, %1 : i1
    %3 = arith.extui %2 : i1 to i32
    %c0_i32_1 = arith.constant 0 : i32
    %4 = arith.cmpi ne, %3, %c0_i32_1 : i32
    scf.if %4 {
      %cst = arith.constant 0.000000e+00 : f32
      %29 = vector.broadcast %cst : f32 to vector<8x256xf32>
      %c0_22 = arith.constant 0 : index
      %c0_23 = arith.constant 0 : index
      %30 = vector.load %arg7[%c0_22, %c0_23] : memref<8x256xf32, #tpu.memory_space<vmem>>, vector<8x256xf32>
      tpu.vector_store %arg7[%c0_22, %c0_23], %29 {strides = array<i32>} : memref<8x256xf32, #tpu.memory_space<vmem>>, vector<8x256xf32>,
      %cst_24 = arith.constant 0.000000e+00 : f32
      %31 = vector.broadcast %cst_24 : f32 to vector<8x256xf32>
      %c0_25 = arith.constant 0 : index
      %c0_26 = arith.constant 0 : index
      %32 = vector.load %arg8[%c0_25, %c0_26] : memref<8x256xf32, #tpu.memory_space<vmem>>, vector<8x256xf32>
      tpu.vector_store %arg8[%c0_25, %c0_26], %31 {strides = array<i32>} : memref<8x256xf32, #tpu.memory_space<vmem>>, vector<8x256xf32>,
      %cst_27 = arith.constant 0.000000e+00 : f32
      %33 = vector.broadcast %cst_27 : f32 to vector<8x256xf32>
      %c0_28 = arith.constant 0 : index
      %c0_29 = arith.constant 0 : index
      %34 = vector.load %arg9[%c0_28, %c0_29] : memref<8x256xf32, #tpu.memory_space<vmem>>, vector<8x256xf32>
      tpu.vector_store %arg9[%c0_28, %c0_29], %33 {strides = array<i32>} : memref<8x256xf32, #tpu.memory_space<vmem>>, vector<8x256xf32>,
    } else {
    }
    %c0 = arith.constant 0 : index
    %c0_2 = arith.constant 0 : index
    %5 = vector.load %arg3[%c0, %c0_2] : memref<1x256xf32, #tpu.memory_space<vmem>>, vector<1x256xf32>
    %c0_3 = arith.constant 0 : index
    %c0_4 = arith.constant 0 : index
    %6 = vector.load %arg4[%c0_3, %c0_4] : memref<8x256xf32, #tpu.memory_space<vmem>>, vector<8x256xf32>
    %c0_5 = arith.constant 0 : index
    %c0_6 = arith.constant 0 : index
    %7 = vector.load %arg5[%c0_5, %c0_6] : memref<8x256xf32, #tpu.memory_space<vmem>>, vector<8x256xf32>
    %8 = vector.broadcast %5 : vector<1x256xf32> to vector<8x256xf32>
    %9 = arith.mulf %8, %6 : vector<8x256xf32>
    %10 = vector.broadcast %5 : vector<1x256xf32> to vector<8x256xf32>
    %11 = arith.mulf %10, %7 : vector<8x256xf32>
    %c0_7 = arith.constant 0 : index
    %c0_8 = arith.constant 0 : index
    %12 = vector.load %arg7[%c0_7, %c0_8] : memref<8x256xf32, #tpu.memory_space<vmem>>, vector<8x256xf32>
    %13 = arith.mulf %9, %7 : vector<8x256xf32>
    %14 = arith.addf %12, %13 : vector<8x256xf32>
    %c0_9 = arith.constant 0 : index
    %c0_10 = arith.constant 0 : index
    %15 = vector.load %arg7[%c0_9, %c0_10] : memref<8x256xf32, #tpu.memory_space<vmem>>, vector<8x256xf32>
    tpu.vector_store %arg7[%c0_9, %c0_10], %14 {strides = array<i32>} : memref<8x256xf32, #tpu.memory_space<vmem>>, vector<8x256xf32>,
    %c0_11 = arith.constant 0 : index
    %c0_12 = arith.constant 0 : index
    %16 = vector.load %arg8[%c0_11, %c0_12] : memref<8x256xf32, #tpu.memory_space<vmem>>, vector<8x256xf32>
    %17 = arith.mulf %9, %6 : vector<8x256xf32>
    %18 = arith.addf %16, %17 : vector<8x256xf32>
    %c0_13 = arith.constant 0 : index
    %c0_14 = arith.constant 0 : index
    %19 = vector.load %arg8[%c0_13, %c0_14] : memref<8x256xf32, #tpu.memory_space<vmem>>, vector<8x256xf32>
    tpu.vector_store %arg8[%c0_13, %c0_14], %18 {strides = array<i32>} : memref<8x256xf32, #tpu.memory_space<vmem>>, vector<8x256xf32>,
    %c0_15 = arith.constant 0 : index
    %c0_16 = arith.constant 0 : index
    %20 = vector.load %arg9[%c0_15, %c0_16] : memref<8x256xf32, #tpu.memory_space<vmem>>, vector<8x256xf32>
    %21 = arith.mulf %11, %7 : vector<8x256xf32>
    %22 = arith.addf %20, %21 : vector<8x256xf32>
    %c0_17 = arith.constant 0 : index
    %c0_18 = arith.constant 0 : index
    %23 = vector.load %arg9[%c0_17, %c0_18] : memref<8x256xf32, #tpu.memory_space<vmem>>, vector<8x256xf32>
    tpu.vector_store %arg9[%c0_17, %c0_18], %22 {strides = array<i32>} : memref<8x256xf32, #tpu.memory_space<vmem>>, vector<8x256xf32>,
    %c0_i32_19 = arith.constant 0 : i32
    %24 = arith.cmpi eq, %arg1, %c0_i32_19 : i32
    %c0_i32_20 = arith.constant 0 : i32
    %25 = arith.cmpi eq, %arg2, %c0_i32_20 : i32
    %26 = arith.andi %24, %25 : i1
    %27 = arith.extui %26 : i1 to i32
    %c0_i32_21 = arith.constant 0 : i32
    %28 = arith.cmpi ne, %27, %c0_i32_21 : i32
    scf.if %28 {
      %c0_22 = arith.constant 0 : index
      %c0_23 = arith.constant 0 : index
      %29 = vector.load %arg7[%c0_22, %c0_23] : memref<8x256xf32, #tpu.memory_space<vmem>>, vector<8x256xf32>
      %30 = vector.shape_cast %29 : vector<8x256xf32> to vector<1x8x256xf32>
      %cst = arith.constant dense<0.000000e+00> : vector<1xf32>
      %31 = vector.multi_reduction <add>, %30, %cst [1, 2] : vector<1x8x256xf32> to vector<1xf32>
      %32 = vector.shape_cast %31 : vector<1xf32> to vector<1x1x1xf32>
      %33 = vector.extract %32[0, 0, 0] : f32 from vector<1x1x1xf32>
      %c0_24 = arith.constant 0 : index
      %c0_25 = arith.constant 0 : index
      %34 = memref.load %arg6[%c0_24, %c0_25] : memref<1x3xf32, #tpu.memory_space<smem>>
      memref.store %33, %arg6[%c0_24, %c0_25] : memref<1x3xf32, #tpu.memory_space<smem>>
      %c0_26 = arith.constant 0 : index
      %c0_27 = arith.constant 0 : index
      %35 = vector.load %arg8[%c0_26, %c0_27] : memref<8x256xf32, #tpu.memory_space<vmem>>, vector<8x256xf32>
      %36 = vector.shape_cast %35 : vector<8x256xf32> to vector<1x8x256xf32>
      %cst_28 = arith.constant dense<0.000000e+00> : vector<1xf32>
      %37 = vector.multi_reduction <add>, %36, %cst_28 [1, 2] : vector<1x8x256xf32> to vector<1xf32>
      %38 = vector.shape_cast %37 : vector<1xf32> to vector<1x1x1xf32>
      %39 = vector.extract %38[0, 0, 0] : f32 from vector<1x1x1xf32>
      %c0_29 = arith.constant 0 : index
      %c1 = arith.constant 1 : index
      %40 = memref.load %arg6[%c0_29, %c1] : memref<1x3xf32, #tpu.memory_space<smem>>
      memref.store %39, %arg6[%c0_29, %c1] : memref<1x3xf32, #tpu.memory_space<smem>>
      %c0_30 = arith.constant 0 : index
      %c0_31 = arith.constant 0 : index
      %41 = vector.load %arg9[%c0_30, %c0_31] : memref<8x256xf32, #tpu.memory_space<vmem>>, vector<8x256xf32>
      %42 = vector.shape_cast %41 : vector<8x256xf32> to vector<1x8x256xf32>
      %cst_32 = arith.constant dense<0.000000e+00> : vector<1xf32>
      %43 = vector.multi_reduction <add>, %42, %cst_32 [1, 2] : vector<1x8x256xf32> to vector<1xf32>
      %44 = vector.shape_cast %43 : vector<1xf32> to vector<1x1x1xf32>
      %45 = vector.extract %44[0, 0, 0] : f32 from vector<1x1x1xf32>
      %c0_33 = arith.constant 0 : index
      %c2 = arith.constant 2 : index
      %46 = memref.load %arg6[%c0_33, %c2] : memref<1x3xf32, #tpu.memory_space<smem>>
      memref.store %45, %arg6[%c0_33, %c2] : memref<1x3xf32, #tpu.memory_space<smem>>
    } else {
    }
    return
  }
  func.func @transform_0(%arg0: i32, %arg1: i32, %arg2: i32) -> (i32, i32) {
    %c0_i32 = arith.constant 0 : i32
    %0 = arith.muli %arg0, %c0_i32 : i32
    %1 = arith.addi %0, %arg1 : i32
    %c0_i32_0 = arith.constant 0 : i32
    %c0_i32_1 = arith.constant 0 : i32
    return %c0_i32_0, %1 : i32, i32
  }
  func.func @transform_1(%arg0: i32, %arg1: i32, %arg2: i32) -> (i32, i32) {
    %c0_i32 = arith.constant 0 : i32
    %0 = arith.muli %arg0, %c0_i32 : i32
    %1 = arith.addi %0, %arg2 : i32
    %c0_i32_0 = arith.constant 0 : i32
    %2 = arith.muli %arg0, %c0_i32_0 : i32
    %3 = arith.addi %2, %arg1 : i32
    %c0_i32_1 = arith.constant 0 : i32
    return %1, %3 : i32, i32
  }
  func.func @transform_2(%arg0: i32, %arg1: i32, %arg2: i32) -> (i32, i32) {
    %c0_i32 = arith.constant 0 : i32
    %0 = arith.muli %arg0, %c0_i32 : i32
    %1 = arith.addi %0, %arg2 : i32
    %c0_i32_0 = arith.constant 0 : i32
    %2 = arith.muli %arg0, %c0_i32_0 : i32
    %3 = arith.addi %2, %arg1 : i32
    %c0_i32_1 = arith.constant 0 : i32
    return %1, %3 : i32, i32
  }
  func.func @transform_3(%arg0: i32, %arg1: i32, %arg2: i32) -> (i32, i32) {
    %c0_i32 = arith.constant 0 : i32
    %c0_i32_0 = arith.constant 0 : i32
    return %arg0, %c0_i32 : i32, i32
  }
}

</mosaic_0001>

<llo_original>
// kernel: tpu_custom_call.1
$region0: #{tpu_custom_call.1}
  #allocation0 [shape = 'u32[]', space=smem, size = 0x4, offset = 0x4, fixed_abs, tag = 'smem constant byte address 0x4 - core index']
  #allocation1 [shape = 'u32[144,128]{1,0:T(1,128)}', space=vmem, size = 0x12000, scoped, tag = 'internal scratch']
  #allocation2 [shape = 'f32[8,256]{1,0:T(8,128)}', space=vmem, size = 0x2000, scoped, tag = 'scratch operand']
  #allocation3 [shape = 'f32[8,256]{1,0:T(8,128)}', space=vmem, size = 0x2000, scoped, tag = 'scratch operand']
  #allocation4 [shape = 'f32[8,256]{1,0:T(8,128)}', space=vmem, size = 0x2000, scoped, tag = 'scratch operand']
  %s0 = inlined_call_operand.hbm [shape: f32[1,256], index: 0, kind: input, shape index: {}]
  %s1 = inlined_call_operand.hbm [shape: f32[8,256], index: 1, kind: input, shape index: {}]
  %s2 = inlined_call_operand.hbm [shape: f32[8,256], index: 2, kind: input, shape index: {}]
  %s3 = inlined_call_operand.hbm [shape: f32[1,3], index: 3, kind: output, shape index: {}]
  %s4 = sld [smem:[#allocation0]]
  $region42: #{tpu_custom_call.1} parent=0
    _
  %s6 = ssub.s32 1, %s4
  %s7 = scalar_select 0, %s6, %s4
  $region1: #{tpu_custom_call.1} parent=0
    #allocation5 [shape = 'u8[1024]{0}', space=vmem, size = 0x400, scoped, tag = 'input window, operand 0, single buffered']
    #allocation6 [shape = 's32[1]{0}', space=sflag, size = 0x4, scoped, tag = 'scoped memory for tpu_custom_call.1']
    #allocation7 [shape = 's32[1]{0}', space=sflag, size = 0x4, scoped, tag = 'scoped memory for tpu_custom_call.1']
    #allocation8 [shape = 'u8[8192]{0}', space=vmem, size = 0x2000, scoped, tag = 'input window, operand 1, single buffered']
    #allocation9 [shape = 's32[1]{0}', space=sflag, size = 0x4, scoped, tag = 'scoped memory for tpu_custom_call.1']
    #allocation10 [shape = 'u8[8192]{0}', space=vmem, size = 0x2000, scoped, tag = 'input window, operand 2, single buffered']
    #allocation11 [shape = 'u8[512]{0}', space=smem, size = 0x200, scoped, tag = 'output window, operand 0, single buffered']
    %8 = vsyncpa [#allocation6], 0
    %9 = vsyncpa [#allocation9], 0
    %10 = vsyncpa [#allocation7], 0
    // Predicated region
    $region2: #{tpu_custom_call.1} parent=1 // pred_check
      _
    $region3: #{tpu_custom_call.1} parent=1 // pred_check_branch
      %12 = sbr.rel (0) target = $region5
    $region4: #{tpu_custom_call.1} parent=1 // pred_region
      %s14 = ssub.s32 32, 32
      %15 = vsyncadd [#allocation6], %s14
      %s17 = sshll.u32 [#allocation5], 4
      %s18 = int_to_ptr.vmem [resolvable:$true] %s17
      %20 = dma.hbm_to_vmem [thread:$0]  %s0, 32, %s18, [#allocation6]
    $region5: #{tpu_custom_call.1} parent=1 // pred_fallthru
      _
    // Predicated region
    $region6: #{tpu_custom_call.1} parent=1 // pred_check
      _
    $region7: #{tpu_custom_call.1} parent=1 // pred_check_branch
      %22 = sbr.rel (0) target = $region9
    $region8: #{tpu_custom_call.1} parent=1 // pred_region
      %s24 = ssub.s32 256, 256
      %25 = vsyncadd [#allocation9], %s24
      %s27 = sshll.u32 [#allocation8], 4
      %s28 = int_to_ptr.vmem [resolvable:$true] %s27
      %30 = dma.hbm_to_vmem [thread:$0]  %s1, 256, %s28, [#allocation9]
    $region9: #{tpu_custom_call.1} parent=1 // pred_fallthru
      _
    // Predicated region
    $region10: #{tpu_custom_call.1} parent=1 // pred_check
      _
    $region11: #{tpu_custom_call.1} parent=1 // pred_check_branch
      %32 = sbr.rel (0) target = $region13
    $region12: #{tpu_custom_call.1} parent=1 // pred_region
      %s34 = ssub.s32 256, 256
      %35 = vsyncadd [#allocation9], %s34
      %s37 = sshll.u32 [#allocation10], 4
      %s38 = int_to_ptr.vmem [resolvable:$true] %s37
      %40 = dma.hbm_to_vmem [thread:$0]  %s2, 256, %s38, [#allocation9]
    $region13: #{tpu_custom_call.1} parent=1 // pred_fallthru
      _
    // Predicated region
    $region14: #{tpu_custom_call.1} parent=1 // pred_check
      _
    $region15: #{tpu_custom_call.1} parent=1 // pred_check_branch
      %42 = sbr.rel (0) target = $region17
    $region16: #{tpu_custom_call.1} parent=1 // pred_region
      %43 = dma.done [#allocation6], 32
    $region17: #{tpu_custom_call.1} parent=1 // pred_fallthru
      _
    // Predicated region
    $region18: #{tpu_custom_call.1} parent=1 // pred_check
      _
    $region19: #{tpu_custom_call.1} parent=1 // pred_check_branch
      %45 = sbr.rel (0) target = $region21
    $region20: #{tpu_custom_call.1} parent=1 // pred_region
      %46 = dma.done [#allocation9], 256
    $region21: #{tpu_custom_call.1} parent=1 // pred_fallthru
      _
    // Predicated region
    $region22: #{tpu_custom_call.1} parent=1 // pred_check
      _
    $region23: #{tpu_custom_call.1} parent=1 // pred_check_branch
      %48 = sbr.rel (0) target = $region25
    $region24: #{tpu_custom_call.1} parent=1 // pred_region
      %49 = dma.done [#allocation9], 256
    $region25: #{tpu_custom_call.1} parent=1 // pred_fallthru
      _
    %p50 = scmp.eq.s32.totalorder 0, 0
    %p51 = scmp.eq.s32.totalorder 0, 0
    %p52 = pnand %p50, %p51
    %p53 = pneg %p52
    // Predicated region
    $region26: #{tpu_custom_call.1} parent=1 // pred_check
      _
    $region27: #{tpu_custom_call.1} parent=1 // pred_check_branch
      %55 = sbr.rel (%p52) target = $region29
    $region28: #{tpu_custom_call.1} parent=1 // pred_region
      %56 = vst [vmem:[#allocation2] sm:$0xff] 0.0
      %57 = vst [vmem:[#allocation2 + $0x8] sm:$0xff] 0.0
      %58 = vst [vmem:[#allocation3] sm:$0xff] 0.0
      %59 = vst [vmem:[#allocation3 + $0x8] sm:$0xff] 0.0
      %60 = vst [vmem:[#allocation4] sm:$0xff] 0.0
      %61 = vst [vmem:[#allocation4 + $0x8] sm:$0xff] 0.0
    $region29: #{tpu_custom_call.1} parent=1 // pred_fallthru
      _
    %v62 = vld [vmem:[#allocation5] sm:$0x3]
    %v63 = vld [vmem:[#allocation8] sm:$0xff]
    %v64 = vld [vmem:[#allocation8 + $0x8] sm:$0xff]
    %v65 = vld [vmem:[#allocation10] sm:$0xff]
    %v66 = vld [vmem:[#allocation10 + $0x8] sm:$0xff]
    %v68 = vlaneseq
    %v69 = vshrl.u32 %v68, 7
    %v70 = vsub.s32 0, %v69
    %v71 = vrot.slane %v62, %v70
    %v72 = vlaneseq
    %v73 = vshrl.u32 %v72, 7
    %v74 = vsub.s32 1, %v73
    %v75 = vrot.slane %v62, %v74
    %v78 = vmul.f32 %v71, %v63
    %v79 = vmul.f32 %v75, %v64
    %v80 = vmul.f32 %v71, %v65
    %v81 = vmul.f32 %v75, %v66
    %v82 = vld [vmem:[#allocation2] sm:$0xff]
    %v83 = vld [vmem:[#allocation2 + $0x8] sm:$0xff]
    %v84 = vmul.f32 %v78, %v65
    %v85 = vmul.f32 %v79, %v66
    %v86 = vadd.f32 %v82, %v84
    %v87 = vadd.f32 %v83, %v85
    %88 = vst [vmem:[#allocation2] sm:$0xff] %v86
    %89 = vst [vmem:[#allocation2 + $0x8] sm:$0xff] %v87
    %v90 = vld [vmem:[#allocation3] sm:$0xff]
    %v91 = vld [vmem:[#allocation3 + $0x8] sm:$0xff]
    %v92 = vmul.f32 %v78, %v63
    %v93 = vmul.f32 %v79, %v64
    %v94 = vadd.f32 %v90, %v92
    %v95 = vadd.f32 %v91, %v93
    %96 = vst [vmem:[#allocation3] sm:$0xff] %v94
    %97 = vst [vmem:[#allocation3 + $0x8] sm:$0xff] %v95
    %v98 = vld [vmem:[#allocation4] sm:$0xff]
    %v99 = vld [vmem:[#allocation4 + $0x8] sm:$0xff]
    %v100 = vmul.f32 %v80, %v65
    %v101 = vmul.f32 %v81, %v66
    %v102 = vadd.f32 %v98, %v100
    %v103 = vadd.f32 %v99, %v101
    %104 = vst [vmem:[#allocation4] sm:$0xff] %v102
    %105 = vst [vmem:[#allocation4 + $0x8] sm:$0xff] %v103
    // Predicated region
    $region30: #{tpu_custom_call.1} parent=1 // pred_check
      _
    $region31: #{tpu_custom_call.1} parent=1 // pred_check_branch
      %107 = sbr.rel (%p52) target = $region33
    $region32: #{tpu_custom_call.1} parent=1 // pred_region
      %v108 = vld [vmem:[#allocation2] sm:$0xff]
      %v109 = vld [vmem:[#allocation2 + $0x8] sm:$0xff]
      %v110 = vadd.f32 %v108, %v109
      %111 = vadd.xlane.f32.xlu0 %v110
      %v112 = vpop.xlane.xlu0 %111
      %v113 = vrot.slane %v112, 4
      %v114 = vadd.f32 %v112, %v113
      %v115 = vrot.slane %v114, 2
      %v116 = vadd.f32 %v114, %v115
      %v117 = vrot.slane %v116, 1
      %v118 = vadd.f32 %v116, %v117
      %s119 = vtos %v118
      %s120 = scalar_lea.smem [#allocation11], 0
      %121 = sst [smem:[%s120]] %s119
      %v122 = vld [vmem:[#allocation3] sm:$0xff]
      %v123 = vld [vmem:[#allocation3 + $0x8] sm:$0xff]
      %v124 = vadd.f32 %v122, %v123
      %125 = vadd.xlane.f32.xlu0 %v124
      %v126 = vpop.xlane.xlu0 %125
      %v127 = vrot.slane %v126, 4
      %v128 = vadd.f32 %v126, %v127
      %v129 = vrot.slane %v128, 2
      %v130 = vadd.f32 %v128, %v129
      %v131 = vrot.slane %v130, 1
      %v132 = vadd.f32 %v130, %v131
      %s133 = vtos %v132
      %s134 = scalar_lea.smem [#allocation11], 1
      %135 = sst [smem:[%s134]] %s133
      %v136 = vld [vmem:[#allocation4] sm:$0xff]
      %v137 = vld [vmem:[#allocation4 + $0x8] sm:$0xff]
      %v138 = vadd.f32 %v136, %v137
      %139 = vadd.xlane.f32.xlu0 %v138
      %v140 = vpop.xlane.xlu0 %139
      %v141 = vrot.slane %v140, 4
      %v142 = vadd.f32 %v140, %v141
      %v143 = vrot.slane %v142, 2
      %v144 = vadd.f32 %v142, %v143
      %v145 = vrot.slane %v144, 1
      %v146 = vadd.f32 %v144, %v145
      %s147 = vtos %v146
      %s148 = scalar_lea.smem [#allocation11], 2
      %149 = sst [smem:[%s148]] %s147
    $region33: #{tpu_custom_call.1} parent=1 // pred_fallthru
      _
    // Predicated region
    $region34: #{tpu_custom_call.1} parent=1 // pred_check
      _
    $region35: #{tpu_custom_call.1} parent=1 // pred_check_branch
      %151 = sbr.rel (0) target = $region37
    $region36: #{tpu_custom_call.1} parent=1 // pred_region
      %s153 = ssub.s32 16, 16
      %154 = vsyncadd [#allocation7], %s153
      %157 = dma.smem_to_hbm [#allocation11], 16, %s3, [#allocation7]
    $region37: #{tpu_custom_call.1} parent=1 // pred_fallthru
      _
    // Predicated region
    $region38: #{tpu_custom_call.1} parent=1 // pred_check
      _
    $region39: #{tpu_custom_call.1} parent=1 // pred_check_branch
      %159 = sbr.rel (0) target = $region41
    $region40: #{tpu_custom_call.1} parent=1 // pred_region
      %160 = dma.done [#allocation7], 16
    $region41: #{tpu_custom_call.1} parent=1 // pred_fallthru
      _
    %161 = sfence
    %162 = vsyncpa [#allocation6], 1
    %163 = vsyncpa [#allocation9], 1
    %164 = vsyncpa [#allocation7], 1

</llo_original>
